<compile_context>
chip_gen: v7x
topology: tpu7x:2x2x1
jax: 0.10.0
libtpu: 0.0.40
codegen_flags: <defaults>
</compile_context>

<pallas_src>
import functools

import jax
import jax.numpy as jnp
from jax import lax
from jax.experimental import pallas as pl
from jax.experimental.pallas import tpu as pltpu

_LANES = 128
_X_BYTES_PER_BUF = 4 * 1024 * 1024     # ~4 MiB of x per pipeline buffer
_MAX_ACC_ROWS = 2048                    # keeps mask / accumulator buffers small
_VMEM_LIMIT_BYTES = 32 * 1024 * 1024    # explicit scoped-VMEM limit (v5e-safe)


def _round_up(x, m):
    return ((x + m - 1) // m) * m


def _cdiv(a, b):
    return (a + b - 1) // b


def _channel_entropy(x):
    """b = sum_c softmax(x)*log_softmax(x) over axis 0; x:(C,BR,128) -> (BR,128)."""
    x = x.astype(jnp.float32)
    xmax = jnp.max(x, axis=0)                      # (BR, 128)
    xs = x - xmax[None]
    ex = jnp.exp(xs)                               # EUP
    se = jnp.sum(ex, axis=0)                       # (BR, 128)
    sxe = jnp.sum(ex * xs, axis=0)                 # (BR, 128)
    # sum_c p*logp == sum_c(ex*xs)/se - log(se).  Exact divide kept on purpose:
    # approx reciprocal perturbs results relative to the 1e-5 rtol check.
    return sxe / se - jnp.log(se)                  # (BR, 128)


def _valid_mask(row0, shape, valid_size):
    """Flat-pixel validity mask for an edge tile whose first row is `row0`."""
    rows = row0 + lax.broadcasted_iota(jnp.int32, shape, 0)
    lanes = lax.broadcasted_iota(jnp.int32, shape, 1)
    return rows * _LANES + lanes < valid_size


def _entropy_kernel_masked(x_ref, m_ref, ent_out_ref, w_out_ref, ent_acc, w_acc,
                           *, tiles_per_split, block_rows, valid_size,
                           needs_mask):
    """mode 1: weighted-entropy and weight partial sums per (batch, split)."""
    p = pl.program_id(1)
    t = pl.program_id(2)

    @pl.when(t == 0)
    def _():
        ent_acc[...] = jnp.zeros_like(ent_acc)
        w_acc[...] = jnp.zeros_like(w_acc)

    b = _channel_entropy(x_ref[0])                                  # (BR, 128)
    w = 1.0 - m_ref[0].astype(jnp.float32) * (1.0 / 255.0)          # (BR, 128)
    bw = b * w

    if needs_mask:
        row0 = (p * tiles_per_split + t) * block_rows
        on_edge = (row0 + block_rows) * _LANES > valid_size

        @pl.when(on_edge)                      # only edge tiles pay for the iota
        def _():
            v = _valid_mask(row0, b.shape, valid_size)
            ent_acc[...] += jnp.where(v, bw, 0.0)
            w_acc[...] += jnp.where(v, w, 0.0)

        @pl.when(jnp.logical_not(on_edge))
        def _():
            ent_acc[...] += bw
            w_acc[...] += w
    else:
        ent_acc[...] += bw
        w_acc[...] += w

    @pl.when(t == tiles_per_split - 1)
    def _():
        ent_out_ref[...] = jnp.sum(ent_acc[...]).reshape(1, 1, 1)
        w_out_ref[...] = jnp.sum(w_acc[...]).reshape(1, 1, 1)


def _entropy_kernel_uniform(x_ref, ent_out_ref, ent_acc, *,
                            tiles_per_split, block_rows, valid_size,
                            needs_mask):
    """mode 2: plain entropy partial sums per (batch, split); no mask stream."""
    p = pl.program_id(1)
    t = pl.program_id(2)

    @pl.when(t == 0)
    def _():
        ent_acc[...] = jnp.zeros_like(ent_acc)

    b = _channel_entropy(x_ref[0])                                  # (BR, 128)

    if needs_mask:
        row0 = (p * tiles_per_split + t) * block_rows
        on_edge = (row0 + block_rows) * _LANES > valid_size

        @pl.when(on_edge)
        def _():
            v = _valid_mask(row0, b.shape, valid_size)
            ent_acc[...] += jnp.where(v, b, 0.0)

        @pl.when(jnp.logical_not(on_edge))
        def _():
            ent_acc[...] += b
    else:
        ent_acc[...] += b

    @pl.when(t == tiles_per_split - 1)
    def _():
        ent_out_ref[...] = jnp.sum(ent_acc[...]).reshape(1, 1, 1)


@functools.partial(jax.jit, static_argnames=("mode",))
def entropy_loss(x, mask, mode=1):
    """EntropyLoss.forward.

    x:    (N, C, H, W); any float dtype (bf16 halves the dominant HBM stream;
          all in-kernel math is f32).
    mask: (N, H, W), values in [0, 255]; streamed in the caller's dtype (pass
          uint8 to cut mask HBM traffic 4x -- there is no wrapper-side cast).
          Ignored when mode != 1.
    """
    n, c, h, w = x.shape
    s = h * w
    s128 = _round_up(s, _LANES)
    r = s128 // _LANES                     # spatial rows of 128 pixels

    # -- spatial repack: (N, C, H, W) -> (N, C, R, 128); free when s % 128 == 0.
    x3 = x.reshape(n, c, s)
    if s128 != s:
        # Only when H*W isn't lane-aligned; pads < 128 columns (one HBM copy).
        # TODO(synk): lane-ragged (N, C, S) fallback kernel to avoid this copy.
        x3 = jnp.pad(x3, ((0, 0), (0, 0), (0, s128 - s)))
    x4 = x3.reshape(n, c, r, _LANES)

    # -- rows per block from the VMEM budget (~4 MiB of x per pipeline buffer).
    rows_budget = _X_BYTES_PER_BUF // (c * _LANES * x.dtype.itemsize)
    rows_cap = max(8, (min(rows_budget, _MAX_ACC_ROWS) // 8) * 8)
    # TODO(synk): split the channel axis (online softmax over C chunks) if C is
    # ever so large that even an 8-row block exceeds the scoped VMEM limit.

    # -- spatial split so both v7x TensorCores have work when N == 1.
    n_split = 2 if (n == 1 and r >= 16) else 1

    block_rows = min(rows_cap, _round_up(_cdiv(r, n_split), 8))
    if block_rows >= r:
        block_rows = r                     # full-dim block (always legal)
    num_row_tiles = _cdiv(r, block_rows)
    if num_row_tiles < n_split:
        n_split = 1
    tiles_per_split = _cdiv(num_row_tiles, n_split)

    covered = n_split * tiles_per_split * block_rows * _LANES
    needs_mask = covered != s              # any ragged / overshoot tile at all?
    clamp = n_split * tiles_per_split > num_row_tiles

    if clamp:
        # Overshoot tiles re-read the last block (keeps the DMA in bounds) and
        # are fully zeroed in-kernel by the flat-pixel validity test.
        def _tile_idx(p, t):
            return jnp.minimum(p * tiles_per_split + t, num_row_tiles - 1)
    else:
        def _tile_idx(p, t):
            return p * tiles_per_split + t

    grid = (n, n_split, tiles_per_split)
    x_spec = pl.BlockSpec((1, c, block_rows, _LANES),
                          lambda i, p, t: (i, 0, _tile_idx(p, t), 0))
    part_spec = pl.BlockSpec((1, 1, 1), lambda i, p, t: (i * n_split + p, 0, 0))
    part_shape = jax.ShapeDtypeStruct((n * n_split, 1, 1), jnp.float32)
    cparams = pltpu.CompilerParams(
        dimension_semantics=("parallel", "parallel", "arbitrary"),
        vmem_limit_bytes=_VMEM_LIMIT_BYTES)
    statics = dict(tiles_per_split=tiles_per_split, block_rows=block_rows,
                   valid_size=s, needs_mask=needs_mask)

    if mode == 1:
        m2 = mask.reshape(n, s)            # caller dtype, no cast (uint8 OK)
        if s128 != s:
            m2 = jnp.pad(m2, ((0, 0), (0, s128 - s)))   # pad cols masked in-kernel
        m4 = m2.reshape(n, r, _LANES)
        m_spec = pl.BlockSpec((1, block_rows, _LANES),
                              lambda i, p, t: (i, _tile_idx(p, t), 0))
        ent_part, w_part = pl.pallas_call(
            functools.partial(_entropy_kernel_masked, **statics),
            out_shape=(part_shape, part_shape),
            grid_spec=pltpu.PrefetchScalarGridSpec(
                num_scalar_prefetch=0,
                grid=grid,
                in_specs=[x_spec, m_spec],
                out_specs=(part_spec, part_spec),
                scratch_shapes=[pltpu.VMEM((block_rows, _LANES), jnp.float32),
                                pltpu.VMEM((block_rows, _LANES), jnp.float32)],
            ),
            compiler_params=cparams,
        )(x4, m4)
        # NOTE: mask == 255 everywhere -> sum(w) == 0 -> inf/nan, identical to
        # the PyTorch module's behavior.
        return -jnp.sum(ent_part) / jnp.sum(w_part)

    # mode 2: uniform weight; no mask DMA, denominator is N*H*W.
    ent_part = pl.pallas_call(
        functools.partial(_entropy_kernel_uniform, **statics),
        out_shape=part_shape,
        grid_spec=pltpu.PrefetchScalarGridSpec(
            num_scalar_prefetch=0,
            grid=grid,
            in_specs=[x_spec],
            out_specs=part_spec,
            scratch_shapes=[pltpu.VMEM((block_rows, _LANES), jnp.float32)],
        ),
        compiler_params=cparams,
    )(x4)
    return -jnp.sum(ent_part) / (n * s)


def _entropy_loss_ref(x, mask, mode=1):
    """Pure-JAX reference mirroring the PyTorch module."""
    logp = jax.nn.log_softmax(x.astype(jnp.float32), axis=1)
    p = jnp.exp(logp)
    b = jnp.sum(p * logp, axis=1)                       # (N, H, W)
    if mode == 1:
        m = 1.0 - mask.astype(jnp.float32) / 255.0
        return -1.0 * jnp.sum(b * m) / jnp.sum(m)
    return -1.0 * jnp.mean(b)


if __name__ == "__main__":
    key = jax.random.PRNGKey(0)
    kx, km, kx2, km2 = jax.random.split(key, 4)

    # Case 1: small lane-aligned NCHW input (H*W % 128 == 0 -> no pad, no mask).
    N, C, H, W = 2, 4, 16, 16
    x = jax.random.normal(kx, (N, C, H, W), dtype=jnp.float32)
    mask = jax.random.uniform(km, (N, H, W), dtype=jnp.float32,
                              minval=0.0, maxval=255.0)

    loss1 = jax.block_until_ready(entropy_loss(x, mask, mode=1))
    loss2 = jax.block_until_ready(entropy_loss(x, mask, mode=2))
    ref1 = _entropy_loss_ref(x, mask, mode=1)
    ref2 = _entropy_loss_ref(x, mask, mode=2)
    assert jnp.allclose(loss1, ref1, rtol=1e-5, atol=1e-6), (loss1, ref1)
    assert jnp.allclose(loss2, ref2, rtol=1e-5, atol=1e-6), (loss2, ref2)

    # Case 2: N == 1 (exercises the 2-way spatial split) with H*W % 128 != 0
    # (exercises ragged-edge masking on the last tile).
    N2, C2, H2, W2 = 1, 3, 33, 65
    x2 = jax.random.normal(kx2, (N2, C2, H2, W2), dtype=jnp.float32)
    mask2 = jax.random.uniform(km2, (N2, H2, W2), dtype=jnp.float32,
                               minval=0.0, maxval=255.0)

    loss1b = jax.block_until_ready(entropy_loss(x2, mask2, mode=1))
    loss2b = jax.block_until_ready(entropy_loss(x2, mask2, mode=2))
    ref1b = _entropy_loss_ref(x2, mask2, mode=1)
    ref2b = _entropy_loss_ref(x2, mask2, mode=2)
    assert jnp.allclose(loss1b, ref1b, rtol=1e-5, atol=1e-6), (loss1b, ref1b)
    assert jnp.allclose(loss2b, ref2b, rtol=1e-5, atol=1e-6), (loss2b, ref2b)

    print("KERNEL_OK")
</pallas_src>

<mosaic_0001>
module attributes {stable_mosaic.version = 11 : i64} {
  func.func @_entropy_kernel_masked(%arg0: i32, %arg1: i32, %arg2: i32, %arg3: memref<1x4x2x128xf32, #tpu.memory_space<vmem>>, %arg4: memref<1x2x128xf32, #tpu.memory_space<vmem>>, %arg5: memref<1x1x1xf32, #tpu.memory_space<vmem>>, %arg6: memref<1x1x1xf32, #tpu.memory_space<vmem>>, %arg7: memref<2x128xf32, #tpu.memory_space<vmem>>, %arg8: memref<2x128xf32, #tpu.memory_space<vmem>>) attributes {dimension_semantics = [#tpu.dimension_semantics<parallel>, #tpu.dimension_semantics<parallel>, #tpu.dimension_semantics<arbitrary>], iteration_bounds = array<i64: 2, 1, 1>, scalar_prefetch = 0 : i64, scratch_operands = 2 : i64, tpu.core_type = #tpu.core_type<tc>, window_params = [{transform_indices = @transform_0, window_bounds = array<i64: 1, 4, 2, 128>}, {transform_indices = @transform_1, window_bounds = array<i64: 1, 2, 128>}, {transform_indices = @transform_2, window_bounds = array<i64: 1, 1, 1>}, {transform_indices = @transform_3, window_bounds = array<i64: 1, 1, 1>}]} {
    %c0_i32 = arith.constant 0 : i32
    %0 = arith.cmpi eq, %arg2, %c0_i32 : i32
    %1 = arith.extui %0 : i1 to i32
    %c0_i32_0 = arith.constant 0 : i32
    %2 = arith.cmpi ne, %1, %c0_i32_0 : i32
    scf.if %2 {
      %cst_21 = arith.constant 0.000000e+00 : f32
      %32 = vector.broadcast %cst_21 : f32 to vector<2x128xf32>
      %c0_22 = arith.constant 0 : index
      %c0_23 = arith.constant 0 : index
      %33 = vector.load %arg7[%c0_22, %c0_23] : memref<2x128xf32, #tpu.memory_space<vmem>>, vector<2x128xf32>
      tpu.vector_store %arg7[%c0_22, %c0_23], %32 {strides = array<i32>} : memref<2x128xf32, #tpu.memory_space<vmem>>, vector<2x128xf32>,
      %cst_24 = arith.constant 0.000000e+00 : f32
      %34 = vector.broadcast %cst_24 : f32 to vector<2x128xf32>
      %c0_25 = arith.constant 0 : index
      %c0_26 = arith.constant 0 : index
      %35 = vector.load %arg8[%c0_25, %c0_26] : memref<2x128xf32, #tpu.memory_space<vmem>>, vector<2x128xf32>
      tpu.vector_store %arg8[%c0_25, %c0_26], %34 {strides = array<i32>} : memref<2x128xf32, #tpu.memory_space<vmem>>, vector<2x128xf32>,
    } else {
    }
    %c0 = arith.constant 0 : index
    %c0_1 = arith.constant 0 : index
    %c0_2 = arith.constant 0 : index
    %c0_3 = arith.constant 0 : index
    %3 = vector.load %arg3[%c0, %c0_1, %c0_2, %c0_3] : memref<1x4x2x128xf32, #tpu.memory_space<vmem>>, vector<1x4x2x128xf32>
    %4 = vector.shape_cast %3 : vector<1x4x2x128xf32> to vector<4x2x128xf32>
    %cst = arith.constant dense<0xFF800000> : vector<2x128xf32>
    %5 = vector.multi_reduction <maximumf>, %4, %cst [0] : vector<4x2x128xf32> to vector<2x128xf32>
    %6 = vector.shape_cast %5 : vector<2x128xf32> to vector<1x2x128xf32>
    %7 = vector.broadcast %6 : vector<1x2x128xf32> to vector<4x2x128xf32>
    %8 = arith.subf %4, %7 : vector<4x2x128xf32>
    %9 = math.exp %8 : vector<4x2x128xf32>
    %cst_4 = arith.constant dense<0.000000e+00> : vector<2x128xf32>
    %10 = vector.multi_reduction <add>, %9, %cst_4 [0] : vector<4x2x128xf32> to vector<2x128xf32>
    %11 = arith.mulf %9, %8 : vector<4x2x128xf32>
    %cst_5 = arith.constant dense<0.000000e+00> : vector<2x128xf32>
    %12 = vector.multi_reduction <add>, %11, %cst_5 [0] : vector<4x2x128xf32> to vector<2x128xf32>
    %13 = arith.divf %12, %10 : vector<2x128xf32>
    %14 = math.log %10 : vector<2x128xf32>
    %15 = arith.subf %13, %14 : vector<2x128xf32>
    %c0_6 = arith.constant 0 : index
    %c0_7 = arith.constant 0 : index
    %c0_8 = arith.constant 0 : index
    %16 = vector.load %arg4[%c0_6, %c0_7, %c0_8] : memref<1x2x128xf32, #tpu.memory_space<vmem>>, vector<1x2x128xf32>
    %17 = vector.shape_cast %16 : vector<1x2x128xf32> to vector<2x128xf32>
    %cst_9 = arith.constant 0.00392156886 : f32
    %18 = vector.broadcast %cst_9 : f32 to vector<2x128xf32>
    %19 = arith.mulf %17, %18 : vector<2x128xf32>
    %cst_10 = arith.constant 1.000000e+00 : f32
    %20 = vector.broadcast %cst_10 : f32 to vector<2x128xf32>
    %21 = arith.subf %20, %19 : vector<2x128xf32>
    %22 = arith.mulf %15, %21 : vector<2x128xf32>
    %c0_11 = arith.constant 0 : index
    %c0_12 = arith.constant 0 : index
    %23 = vector.load %arg7[%c0_11, %c0_12] : memref<2x128xf32, #tpu.memory_space<vmem>>, vector<2x128xf32>
    %24 = arith.addf %23, %22 : vector<2x128xf32>
    %c0_13 = arith.constant 0 : index
    %c0_14 = arith.constant 0 : index
    %25 = vector.load %arg7[%c0_13, %c0_14] : memref<2x128xf32, #tpu.memory_space<vmem>>, vector<2x128xf32>
    tpu.vector_store %arg7[%c0_13, %c0_14], %24 {strides = array<i32>} : memref<2x128xf32, #tpu.memory_space<vmem>>, vector<2x128xf32>,
    %c0_15 = arith.constant 0 : index
    %c0_16 = arith.constant 0 : index
    %26 = vector.load %arg8[%c0_15, %c0_16] : memref<2x128xf32, #tpu.memory_space<vmem>>, vector<2x128xf32>
    %27 = arith.addf %26, %21 : vector<2x128xf32>
    %c0_17 = arith.constant 0 : index
    %c0_18 = arith.constant 0 : index
    %28 = vector.load %arg8[%c0_17, %c0_18] : memref<2x128xf32, #tpu.memory_space<vmem>>, vector<2x128xf32>
    tpu.vector_store %arg8[%c0_17, %c0_18], %27 {strides = array<i32>} : memref<2x128xf32, #tpu.memory_space<vmem>>, vector<2x128xf32>,
    %c0_i32_19 = arith.constant 0 : i32
    %29 = arith.cmpi eq, %arg2, %c0_i32_19 : i32
    %30 = arith.extui %29 : i1 to i32
    %c0_i32_20 = arith.constant 0 : i32
    %31 = arith.cmpi ne, %30, %c0_i32_20 : i32
    scf.if %31 {
      %c0_21 = arith.constant 0 : index
      %c0_22 = arith.constant 0 : index
      %32 = vector.load %arg7[%c0_21, %c0_22] : memref<2x128xf32, #tpu.memory_space<vmem>>, vector<2x128xf32>
      %33 = vector.shape_cast %32 : vector<2x128xf32> to vector<1x2x128xf32>
      %cst_23 = arith.constant dense<0.000000e+00> : vector<1xf32>
      %34 = vector.multi_reduction <add>, %33, %cst_23 [1, 2] : vector<1x2x128xf32> to vector<1xf32>
      %35 = vector.shape_cast %34 : vector<1xf32> to vector<1x1x1xf32>
      %36 = vector.extract %35[0, 0, 0] : f32 from vector<1x1x1xf32>
      %37 = vector.broadcast %36 : f32 to vector<1x1x1xf32>
      %c0_24 = arith.constant 0 : index
      %c0_25 = arith.constant 0 : index
      %c0_26 = arith.constant 0 : index
      %38 = vector.load %arg5[%c0_24, %c0_25, %c0_26] : memref<1x1x1xf32, #tpu.memory_space<vmem>>, vector<1x1x1xf32>
      tpu.vector_store %arg5[%c0_24, %c0_25, %c0_26], %37 {strides = array<i32>} : memref<1x1x1xf32, #tpu.memory_space<vmem>>, vector<1x1x1xf32>,
      %c0_27 = arith.constant 0 : index
      %c0_28 = arith.constant 0 : index
      %39 = vector.load %arg8[%c0_27, %c0_28] : memref<2x128xf32, #tpu.memory_space<vmem>>, vector<2x128xf32>
      %40 = vector.shape_cast %39 : vector<2x128xf32> to vector<1x2x128xf32>
      %cst_29 = arith.constant dense<0.000000e+00> : vector<1xf32>
      %41 = vector.multi_reduction <add>, %40, %cst_29 [1, 2] : vector<1x2x128xf32> to vector<1xf32>
      %42 = vector.shape_cast %41 : vector<1xf32> to vector<1x1x1xf32>
      %43 = vector.extract %42[0, 0, 0] : f32 from vector<1x1x1xf32>
      %44 = vector.broadcast %43 : f32 to vector<1x1x1xf32>
      %c0_30 = arith.constant 0 : index
      %c0_31 = arith.constant 0 : index
      %c0_32 = arith.constant 0 : index
      %45 = vector.load %arg6[%c0_30, %c0_31, %c0_32] : memref<1x1x1xf32, #tpu.memory_space<vmem>>, vector<1x1x1xf32>
      tpu.vector_store %arg6[%c0_30, %c0_31, %c0_32], %44 {strides = array<i32>} : memref<1x1x1xf32, #tpu.memory_space<vmem>>, vector<1x1x1xf32>,
    } else {
    }
    return
  }
  func.func @transform_0(%arg0: i32, %arg1: i32, %arg2: i32) -> (i32, i32, i32, i32) {
    %c1_i32 = arith.constant 1 : i32
    %0 = arith.muli %arg1, %c1_i32 : i32
    %1 = arith.addi %0, %arg2 : i32
    %c0_i32 = arith.constant 0 : i32
    %c0_i32_0 = arith.constant 0 : i32
    %c0_i32_1 = arith.constant 0 : i32
    return %arg0, %c0_i32, %1, %c0_i32_0 : i32, i32, i32, i32
  }
  func.func @transform_1(%arg0: i32, %arg1: i32, %arg2: i32) -> (i32, i32, i32) {
    %c1_i32 = arith.constant 1 : i32
    %0 = arith.muli %arg1, %c1_i32 : i32
    %1 = arith.addi %0, %arg2 : i32
    %c0_i32 = arith.constant 0 : i32
    %c0_i32_0 = arith.constant 0 : i32
    return %arg0, %1, %c0_i32 : i32, i32, i32
  }
  func.func @transform_2(%arg0: i32, %arg1: i32, %arg2: i32) -> (i32, i32, i32) {
    %c1_i32 = arith.constant 1 : i32
    %0 = arith.muli %arg0, %c1_i32 : i32
    %1 = arith.addi %0, %arg1 : i32
    %c0_i32 = arith.constant 0 : i32
    %c0_i32_0 = arith.constant 0 : i32
    %c0_i32_1 = arith.constant 0 : i32
    return %1, %c0_i32, %c0_i32_0 : i32, i32, i32
  }
  func.func @transform_3(%arg0: i32, %arg1: i32, %arg2: i32) -> (i32, i32, i32) {
    %c1_i32 = arith.constant 1 : i32
    %0 = arith.muli %arg0, %c1_i32 : i32
    %1 = arith.addi %0, %arg1 : i32
    %c0_i32 = arith.constant 0 : i32
    %c0_i32_0 = arith.constant 0 : i32
    %c0_i32_1 = arith.constant 0 : i32
    return %1, %c0_i32, %c0_i32_0 : i32, i32, i32
  }
}

</mosaic_0001>

<llo_original>
// kernel: entropy_loss.1
$region0: #{entropy_loss.1}
  #allocation0 [shape = 'u32[]', space=smem, size = 0x4, offset = 0x4, fixed_abs, tag = 'smem constant byte address 0x4 - core index']
  #allocation1 [shape = 'u32[144,128]{1,0:T(1,128)}', space=vmem, size = 0x12000, scoped, tag = 'internal scratch']
  #allocation2 [shape = 'f32[2,128]{1,0:T(2,128)}', space=vmem, size = 0x400, scoped, tag = 'scratch operand']
  #allocation3 [shape = 'f32[2,128]{1,0:T(2,128)}', space=vmem, size = 0x400, scoped, tag = 'scratch operand']
  %s0 = inlined_call_operand.vmem [shape: f32[2,4,2,128], index: 0, kind: input, shape index: {}]
  %s1 = inlined_call_operand.vmem [shape: f32[2,2,128], index: 1, kind: input, shape index: {}]
  %s2 = inlined_call_operand.vmem [shape: f32[2,1,1], index: 2, kind: output, shape index: {0}]
  %s3 = inlined_call_operand.vmem [shape: f32[2,1,1], index: 3, kind: output, shape index: {1}]
  %4 = xla_tuple %s2, %s3
  %s5 = sld [smem:[#allocation0]]
  $region57: #{entropy_loss.1} parent=0
    _
  %s7 = ssub.s32 1, %s5
  %s8 = scalar_select 0, %s7, %s5
  loop: start=0, step=1, limit=4
  $region2: #{entropy_loss.1} parent=0 // loop_pre_header
    _
  $region3: #{entropy_loss.1} parent=0 // loop_header
    %s10 = sphi 0, %s14
    %p11 = scmp.ge.s32.totalorder %s10, 4
    %s17 = sphi 0, %s36
    %s18 = sphi 0, %s32
    %s19 = sphi 0, %s28
    %s20 = sphi 0, %s17
    %s21 = sphi 0, %s18
    %s22 = sphi 0, %s19
    %s23 = sphi 0, %s20
    %s24 = sphi 0, %s21
    %s25 = sphi 0, %s22
    %s43 = sphi 0, %s45
    %s46 = sphi 0, %s43
    %s47 = sphi 0, %s46
    %s63 = sphi 0, %s47
    %s73 = sphi 0, %s75
    %s76 = sphi 0, %s73
    %s77 = sphi 0, %s76
    %s93 = sphi 0, %s77
    %s101 = sphi 0, %s103
    %s104 = sphi 0, %s101
    %s105 = sphi 0, %s104
    %s121 = sphi 0, %s105
    %s129 = sphi 0, %s131
    %s132 = sphi 0, %s129
    %s133 = sphi 0, %s132
    %s149 = sphi 0, %s133
  $region4: #{entropy_loss.1} parent=0 // loop_header_branch
    %13 = sbr.rel (%p11) target = $region8
  $region5: #{entropy_loss.1} parent=0 // loop_body
    %s15 = ssub.s32 %s10, 1
    %s16 = ssub.s32 %s10, 2
    %s26 = sadd.s32 1, %s19
    %p27 = scmp.ge.s32.totalorder %s26, 1
    %s28 = scalar_select %p27, 0, %s26
    %s29 = sadd.s32 1, %s18
    %s30 = scalar_select %p27, %s29, %s18
    %p31 = scmp.ge.s32.totalorder %s30, 1
    %s32 = scalar_select %p31, 0, %s30
    %s33 = sadd.s32 1, %s17
    %s34 = scalar_select %p31, %s33, %s17
    %p35 = scmp.ge.s32.totalorder %s34, 2
    %s36 = scalar_select %p35, 0, %s34
    %s37 = sadd.s32 %s18, %s19
    %s38 = sadd.s32 %s32, %s28
    %s39 = ssub.s32 %s17, %s36
    %s40 = ssub.s32 %s37, %s38
    %s41 = sor.u32 %s39, %s40
    %p42 = scmp.eq.s32.totalorder %s41, 0
    %s44 = sadd.s32 %s43, 1
    %s45 = scalar_select %p42, %s43, %s44
    %p48 = pneg %p42
    %p49 = scmp.eq.s32.totalorder %s10, 1
    %p50 = por %p48, %p49
    %p51 = scmp.ne.s32.totalorder %s43, %s46
    %p52 = scmp.eq.s32.totalorder %s10, 0
    %p53 = por %p51, %p52
    %p54 = scmp.ne.s32.totalorder %s43, %s46
    %p55 = scmp.eq.s32.totalorder %s15, 1
    %p56 = por %p54, %p55
    %p57 = scmp.ne.s32.totalorder %s46, %s47
    %p58 = scmp.eq.s32.totalorder %s15, 0
    %p59 = por %p57, %p58
    %p60 = scmp.ne.s32.totalorder %s46, %s47
    %p61 = scmp.eq.s32.totalorder %s16, 1
    %p62 = por %p60, %p61
    %p64 = scmp.ne.s32.totalorder %s47, %s63
    %p65 = scmp.eq.s32.totalorder %s16, 0
    %p66 = por %p64, %p65
    %s67 = sadd.s32 %s18, %s19
    %s68 = sadd.s32 %s32, %s28
    %s69 = ssub.s32 %s17, %s36
    %s70 = ssub.s32 %s67, %s68
    %s71 = sor.u32 %s69, %s70
    %p72 = scmp.eq.s32.totalorder %s71, 0
    %s74 = sadd.s32 %s73, 1
    %s75 = scalar_select %p72, %s73, %s74
    %p78 = pneg %p72
    %p79 = scmp.eq.s32.totalorder %s10, 1
    %p80 = por %p78, %p79
    %p81 = scmp.ne.s32.totalorder %s73, %s76
    %p82 = scmp.eq.s32.totalorder %s10, 0
    %p83 = por %p81, %p82
    %p84 = scmp.ne.s32.totalorder %s73, %s76
    %p85 = scmp.eq.s32.totalorder %s15, 1
    %p86 = por %p84, %p85
    %p87 = scmp.ne.s32.totalorder %s76, %s77
    %p88 = scmp.eq.s32.totalorder %s15, 0
    %p89 = por %p87, %p88
    %p90 = scmp.ne.s32.totalorder %s76, %s77
    %p91 = scmp.eq.s32.totalorder %s16, 1
    %p92 = por %p90, %p91
    %p94 = scmp.ne.s32.totalorder %s77, %s93
    %p95 = scmp.eq.s32.totalorder %s16, 0
    %p96 = por %p94, %p95
    %s97 = sadd.s32 %s17, %s18
    %s98 = sadd.s32 %s36, %s32
    %s99 = ssub.s32 %s97, %s98
    %p100 = scmp.eq.s32.totalorder %s99, 0
    %s102 = sadd.s32 %s101, 1
    %s103 = scalar_select %p100, %s101, %s102
    %p106 = pneg %p100
    %p107 = scmp.eq.s32.totalorder %s10, 1
    %p108 = por %p106, %p107
    %p109 = scmp.ne.s32.totalorder %s101, %s104
    %p110 = scmp.eq.s32.totalorder %s10, 0
    %p111 = por %p109, %p110
    %p112 = scmp.ne.s32.totalorder %s101, %s104
    %p113 = scmp.eq.s32.totalorder %s15, 1
    %p114 = por %p112, %p113
    %p115 = scmp.ne.s32.totalorder %s104, %s105
    %p116 = scmp.eq.s32.totalorder %s15, 0
    %p117 = por %p115, %p116
    %p118 = scmp.ne.s32.totalorder %s104, %s105
    %p119 = scmp.eq.s32.totalorder %s16, 1
    %p120 = por %p118, %p119
    %p122 = scmp.ne.s32.totalorder %s105, %s121
    %p123 = scmp.eq.s32.totalorder %s16, 0
    %p124 = por %p122, %p123
    %s125 = sadd.s32 %s17, %s18
    %s126 = sadd.s32 %s36, %s32
    %s127 = ssub.s32 %s125, %s126
    %p128 = scmp.eq.s32.totalorder %s127, 0
    %s130 = sadd.s32 %s129, 1
    %s131 = scalar_select %p128, %s129, %s130
    %p134 = pneg %p128
    %p135 = scmp.eq.s32.totalorder %s10, 1
    %p136 = por %p134, %p135
    %p137 = scmp.ne.s32.totalorder %s129, %s132
    %p138 = scmp.eq.s32.totalorder %s10, 0
    %p139 = por %p137, %p138
    %p140 = scmp.ne.s32.totalorder %s129, %s132
    %p141 = scmp.eq.s32.totalorder %s15, 1
    %p142 = por %p140, %p141
    %p143 = scmp.ne.s32.totalorder %s132, %s133
    %p144 = scmp.eq.s32.totalorder %s15, 0
    %p145 = por %p143, %p144
    %p146 = scmp.ne.s32.totalorder %s132, %s133
    %p147 = scmp.eq.s32.totalorder %s16, 1
    %p148 = por %p146, %p147
    %p150 = scmp.ne.s32.totalorder %s133, %s149
    %p151 = scmp.eq.s32.totalorder %s16, 0
    %p152 = por %p150, %p151
    %p153 = scmp.le.s32.totalorder 1, %s10
    %p154 = scmp.lt.s32.totalorder %s10, 3
    %p155 = pnand %p153, %p154
    %p156 = pneg %p155
    // Predicated region
    $region9: #{entropy_loss.1} parent=5 // pred_check
      _
    $region10: #{entropy_loss.1} parent=5 // pred_check_branch
      %158 = sbr.rel (%p155) target = $region12
    $region11: #{entropy_loss.1} parent=5 // pred_region
      %s159 = ssub.s32 %s10, 1
    $region12: #{entropy_loss.1} parent=5 // pred_fallthru
      _
    %p160 = scmp.lt.s32.totalorder %s10, 2
    // Predicated region
    $region13: #{entropy_loss.1} parent=5 // pred_check
      %p161 = pneg %p160
    $region14: #{entropy_loss.1} parent=5 // pred_check_branch
      %163 = sbr.rel (%p161) target = $region16
    $region15: #{entropy_loss.1} parent=5 // pred_region
      // Predicated region
      $region17: #{entropy_loss.1} parent=15 // pred_check
        %p164 = pneg %p53
      $region18: #{entropy_loss.1} parent=15 // pred_check_branch
        %166 = sbr.rel (%p164) target = $region20
      $region19: #{entropy_loss.1} parent=15 // pred_region
        %s167 = sadd.s32 %s18, %s19
        %p168 = scmp.lt.s32.totalorder %s17, 1
        %s169 = scalar_select %p168, %s17, 1
        %p170 = scmp.lt.s32.totalorder %s167, 0
        %s171 = scalar_select %p170, %s167, 0
        %s172 = smul.addr %s169, 4
        %s173 = sadd.s32 %s171, %s172
        %s174 = smul.addr %s173, 2
        %s175 = scalar_lea.vmem %s0, %s174
        %s176 = sadd.s32 %s18, %s19
      $region20: #{entropy_loss.1} parent=15 // pred_fallthru
        _
      // Predicated region
      $region21: #{entropy_loss.1} parent=15 // pred_check
        %p177 = pneg %p83
      $region22: #{entropy_loss.1} parent=15 // pred_check_branch
        %179 = sbr.rel (%p177) target = $region24
      $region23: #{entropy_loss.1} parent=15 // pred_region
        %s180 = sadd.s32 %s18, %s19
        %p181 = scmp.lt.s32.totalorder %s17, 1
        %s182 = scalar_select %p181, %s17, 1
        %p183 = scmp.lt.s32.totalorder %s180, 0
        %s184 = scalar_select %p183, %s180, 0
        %s185 = sadd.s32 %s184, %s182
        %s186 = smul.addr %s185, 2
        %s187 = scalar_lea.vmem %s1, %s186
        %s188 = sadd.s32 %s18, %s19
      $region24: #{entropy_loss.1} parent=15 // pred_fallthru
        _
    $region16: #{entropy_loss.1} parent=5 // pred_fallthru
      _
    %p189 = scmp.le.s32.totalorder 1, %s10
    %p190 = scmp.lt.s32.totalorder %s10, 3
    %p191 = pnand %p189, %p190
    %p192 = pneg %p191
    // Predicated region
    $region25: #{entropy_loss.1} parent=5 // pred_check
      _
    $region26: #{entropy_loss.1} parent=5 // pred_check_branch
      %194 = sbr.rel (%p191) target = $region28
    $region27: #{entropy_loss.1} parent=5 // pred_region
      %s195 = ssub.s32 %s10, 1
      %s196 = sadd.s32 %s21, %s22
      %p197 = scmp.lt.s32.totalorder %s20, 1
      %s198 = scalar_select %p197, %s20, 1
      %p199 = scmp.lt.s32.totalorder %s196, 0
      %s200 = scalar_select %p199, %s196, 0
      %s201 = smul.addr %s198, 4
      %s202 = sadd.s32 %s200, %s201
      %s203 = smul.addr %s202, 2
      %s204 = scalar_lea.vmem %s0, %s203
      %p205 = pneg %p59
      %p206 = pneg %p56
      %s207 = sadd.s32 %s21, %s22
      %p208 = scmp.lt.s32.totalorder %s20, 1
      %s209 = scalar_select %p208, %s20, 1
      %p210 = scmp.lt.s32.totalorder %s207, 0
      %s211 = scalar_select %p210, %s207, 0
      %s212 = sadd.s32 %s211, %s209
      %s213 = smul.addr %s212, 2
      %s214 = scalar_lea.vmem %s1, %s213
      %p215 = pneg %p89
      %p216 = pneg %p86
      %p217 = pneg %p117
      %p218 = pneg %p114
      %s219 = sadd.s32 %s20, %s21
      %p220 = scmp.lt.s32.totalorder %s219, 1
      %s221 = scalar_select %p220, %s219, 1
      %s222 = scalar_lea.vmem %s2, %s221
      %p223 = pneg %p145
      %p224 = pneg %p142
      %s225 = sadd.s32 %s20, %s21
      %p226 = scmp.lt.s32.totalorder %s225, 1
      %s227 = scalar_select %p226, %s225, 1
      %s228 = scalar_lea.vmem %s3, %s227
      %s229 = sadd.s32 %s21, %s22
      %p230 = scmp.lt.s32.totalorder %s20, 1
      %s231 = scalar_select %p230, %s20, 1
      %p232 = scmp.lt.s32.totalorder %s229, 0
      %s233 = scalar_select %p232, %s229, 0
      %s234 = smul.addr %s231, 4
      %s235 = sadd.s32 %s233, %s234
      %s236 = smul.addr %s235, 2
      %s237 = scalar_lea.vmem %s0, %s236
      %s238 = sadd.s32 %s21, %s22
      %s239 = sadd.s32 %s21, %s22
      %p240 = scmp.lt.s32.totalorder %s20, 1
      %s241 = scalar_select %p240, %s20, 1
      %p242 = scmp.lt.s32.totalorder %s239, 0
      %s243 = scalar_select %p242, %s239, 0
      %s244 = sadd.s32 %s243, %s241
      %s245 = smul.addr %s244, 2
      %s246 = scalar_lea.vmem %s1, %s245
      %s247 = sadd.s32 %s21, %s22
      %s248 = sadd.s32 %s20, %s21
      %p249 = scmp.lt.s32.totalorder %s248, 1
      %s250 = scalar_select %p249, %s248, 1
      %s251 = scalar_lea.vmem %s2, %s250
      %s252 = sadd.s32 %s20, %s21
      %s253 = sadd.s32 %s20, %s21
      %p254 = scmp.lt.s32.totalorder %s253, 1
      %s255 = scalar_select %p254, %s253, 1
      %s256 = scalar_lea.vmem %s3, %s255
      %s257 = sadd.s32 %s20, %s21
      %p258 = scmp.eq.s32.totalorder %s22, 0
      // Predicated region
      $region29: #{entropy_loss.1} parent=27 // pred_check
        %p259 = pneg %p258
      $region30: #{entropy_loss.1} parent=27 // pred_check_branch
        %261 = sbr.rel (%p259) target = $region32
      $region31: #{entropy_loss.1} parent=27 // pred_region
        %262 = vst [vmem:[#allocation2] sm:$0x3] 0.0
        %263 = vst [vmem:[#allocation3] sm:$0x3] 0.0
      $region32: #{entropy_loss.1} parent=27 // pred_fallthru
        _
      %v264 = vld [vmem:[%s237] sm:$0x3]
      %v265 = vld [vmem:[%s237 + $0x2] sm:$0x3]
      %v266 = vld [vmem:[%s237 + $0x4] sm:$0x3]
      %v267 = vld [vmem:[%s237 + $0x6] sm:$0x3]
      %vm268 = vcmask 1041408
      %v269 = vsel %vm268, %v264, -inf
      %v270 = vsel %vm268, %v265, -inf
      %v271 = vsel %vm268, %v266, -inf
      %v272 = vsel %vm268, %v267, -inf
      %v273 = vmax.f32 %v269, %v270
      %v274 = vmax.f32 %v271, %v272
      %v275 = vmax.f32 %v273, %v274
      %v276 = vsub.f32 %v264, %v275
      %v277 = vsub.f32 %v265, %v275
      %v278 = vsub.f32 %v266, %v275
      %v279 = vsub.f32 %v267, %v275
      %v280 = vmul.f32 %v276, 1.442695
      %v281 = vpow.pop %v280
      %v282 = vmul.f32 %v277, 1.442695
      %v283 = vpow.pop %v282
      %v284 = vmul.f32 %v278, 1.442695
      %v285 = vpow.pop %v284
      %v286 = vmul.f32 %v279, 1.442695
      %v287 = vpow.pop %v286
      %v288 = vsel %vm268, %v281, 0.0
      %v289 = vsel %vm268, %v283, 0.0
      %v290 = vadd.f32 %v288, %v289
      %v291 = vsel %vm268, %v285, 0.0
      %v292 = vadd.f32 %v290, %v291
      %v293 = vsel %vm268, %v287, 0.0
      %v294 = vadd.f32 %v292, %v293
      %v295 = vmul.f32 %v281, %v276
      %v296 = vmul.f32 %v283, %v277
      %v297 = vmul.f32 %v285, %v278
      %v298 = vmul.f32 %v287, %v279
      %v299 = vsel %vm268, %v295, 0.0
      %v300 = vsel %vm268, %v296, 0.0
      %v301 = vadd.f32 %v299, %v300
      %v302 = vsel %vm268, %v297, 0.0
      %v303 = vadd.f32 %v301, %v302
      %v304 = vsel %vm268, %v298, 0.0
      %v305 = vadd.f32 %v303, %v304
      %v306 = vrcp.pop %v294
      %v307 = vmul.f32 %v305, %v306
      %v308 = vlog2.pop %v294
      %v309 = vmul.f32 %v308, 0.6931472
      %v310 = vsub.f32 %v307, %v309
      %v311 = vld [vmem:[%s246] sm:$0x3]
      %v312 = vmul.f32 %v311, 0.003921569
      %v313 = vsub.f32 1.0, %v312
      %v314 = vmul.f32 %v310, %v313
      %v315 = vld [vmem:[#allocation2] sm:$0x3]
      %v316 = vadd.f32 %v315, %v314
      %317 = vst [vmem:[#allocation2] sm:$0x3] %v316
      %v318 = vld [vmem:[#allocation3] sm:$0x3]
      %v319 = vadd.f32 %v318, %v313
      %320 = vst [vmem:[#allocation3] sm:$0x3] %v319
      // Predicated region
      $region33: #{entropy_loss.1} parent=27 // pred_check
        %p321 = pneg %p258
      $region34: #{entropy_loss.1} parent=27 // pred_check_branch
        %323 = sbr.rel (%p321) target = $region36
      $region35: #{entropy_loss.1} parent=27 // pred_region
        %v324 = vld [vmem:[#allocation2] sm:$0x3]
        %v325 = vsel %vm268, %v324, 0.0
        %326 = vadd.xlane.f32.xlu0 %v325
        %v327 = vpop.xlane.xlu0 %326
        %v328 = vrot.slane %v327, 4
        %v329 = vadd.f32 %v327, %v328
        %v330 = vrot.slane %v329, 2
        %v331 = vadd.f32 %v329, %v330
        %v332 = vrot.slane %v331, 1
        %v333 = vadd.f32 %v331, %v332
        %s334 = vtos %v333
        %v335 = vstv %s334
        %vm336 = vcmask 0
        %337 = vst.msk [vmem:[%s251] sm:$0x1] %vm336, %v335
        %v338 = vld [vmem:[#allocation3] sm:$0x3]
        %v339 = vsel %vm268, %v338, 0.0
        %340 = vadd.xlane.f32.xlu0 %v339
        %v341 = vpop.xlane.xlu0 %340
        %v342 = vrot.slane %v341, 4
        %v343 = vadd.f32 %v341, %v342
        %v344 = vrot.slane %v343, 2
        %v345 = vadd.f32 %v343, %v344
        %v346 = vrot.slane %v345, 1
        %v347 = vadd.f32 %v345, %v346
        %s348 = vtos %v347
        %v349 = vstv %s348
        %350 = vst.msk [vmem:[%s256] sm:$0x1] %vm336, %v349
      $region36: #{entropy_loss.1} parent=27 // pred_fallthru
        _
      %s351 = sadd.s32 %s20, %s21
      %p352 = scmp.lt.s32.totalorder %s351, 1
      %s353 = scalar_select %p352, %s351, 1
      %s354 = scalar_lea.vmem %s2, %s353
      %s355 = sadd.s32 %s20, %s21
      %p356 = scmp.lt.s32.totalorder %s355, 1
      %s357 = scalar_select %p356, %s355, 1
      %s358 = scalar_lea.vmem %s3, %s357
      // Predicated region
      $region37: #{entropy_loss.1} parent=27 // pred_check
        %p359 = pneg %p114
      $region38: #{entropy_loss.1} parent=27 // pred_check_branch
        %361 = sbr.rel (%p359) target = $region40
      $region39: #{entropy_loss.1} parent=27 // pred_region
        %s362 = sadd.s32 %s20, %s21
      $region40: #{entropy_loss.1} parent=27 // pred_fallthru
        _
      // Predicated region
      $region41: #{entropy_loss.1} parent=27 // pred_check
        %p363 = pneg %p142
      $region42: #{entropy_loss.1} parent=27 // pred_check_branch
        %365 = sbr.rel (%p363) target = $region44
      $region43: #{entropy_loss.1} parent=27 // pred_region
        %s366 = sadd.s32 %s20, %s21
      $region44: #{entropy_loss.1} parent=27 // pred_fallthru
        _
    $region28: #{entropy_loss.1} parent=5 // pred_fallthru
      _
    %p367 = scmp.le.s32.totalorder 2, %s10
    // Predicated region
    $region45: #{entropy_loss.1} parent=5 // pred_check
      %p368 = pneg %p367
    $region46: #{entropy_loss.1} parent=5 // pred_check_branch
      %370 = sbr.rel (%p368) target = $region48
    $region47: #{entropy_loss.1} parent=5 // pred_region
      %s371 = ssub.s32 %s10, 2
      // Predicated region
      $region49: #{entropy_loss.1} parent=47 // pred_check
        %p372 = pneg %p120
      $region50: #{entropy_loss.1} parent=47 // pred_check_branch
        %374 = sbr.rel (%p372) target = $region52
      $region51: #{entropy_loss.1} parent=47 // pred_region
        %s375 = sadd.s32 %s23, %s24
        %p376 = scmp.lt.s32.totalorder %s375, 1
        %s377 = scalar_select %p376, %s375, 1
        %s378 = scalar_lea.vmem %s2, %s377
      $region52: #{entropy_loss.1} parent=47 // pred_fallthru
        _
      // Predicated region
      $region53: #{entropy_loss.1} parent=47 // pred_check
        %p379 = pneg %p148
      $region54: #{entropy_loss.1} parent=47 // pred_check_branch
        %381 = sbr.rel (%p379) target = $region56
      $region55: #{entropy_loss.1} parent=47 // pred_region
        %s382 = sadd.s32 %s23, %s24
        %p383 = scmp.lt.s32.totalorder %s382, 1
        %s384 = scalar_select %p383, %s382, 1
        %s385 = scalar_lea.vmem %s3, %s384
      $region56: #{entropy_loss.1} parent=47 // pred_fallthru
        _
    $region48: #{entropy_loss.1} parent=5 // pred_fallthru
      _
  $region6: #{entropy_loss.1} parent=0 // loop_footer
    %s14 = sadd.s32 1, %s10
  $region7: #{entropy_loss.1} parent=0 // loop_footer_branch
    %9 = sbr.rel target = $region3
  $region8: #{entropy_loss.1} parent=0 // loop_exit
    _

</llo_original>
